<compile_context>
chip_gen: v7x
topology: tpu7x:2x2x1
jax: 0.10.0
libtpu: 0.0.40
codegen_flags: <defaults>
</compile_context>

<pallas_src>
import functools

import numpy as np
import jax
import jax.numpy as jnp
from jax.experimental import pallas as pl
from jax.experimental.pallas import tpu as pltpu


def _round_up(x, m):
    return (x + m - 1) // m * m


def _pad2(x, rows, cols):
    r, c = x.shape
    if r == rows and c == cols:
        return x
    return jnp.pad(x, ((0, rows - r), (0, cols - c)))


# ---------------------------------------------------------------------------
# Generation-aware budgets
# ---------------------------------------------------------------------------

def _detect_vmem_capacity():
    try:
        return int(pltpu.get_tpu_info().vmem_capacity_bytes)
    except Exception:
        return 128 * 1024 * 1024


_VMEM_CAPACITY = _detect_vmem_capacity()
_SMALL_VMEM = _VMEM_CAPACITY <= 96 * 1024 * 1024          # v7x-class (64 MiB / TC)
_MM_VMEM_LIMIT = (44 if _SMALL_VMEM else 80) * 1024 * 1024
_MM_VMEM_LIMIT = min(_MM_VMEM_LIMIT,
                     max(32 * 1024 * 1024, (_VMEM_CAPACITY * 2) // 3))
_K_TILE_CANDIDATES = (1024, 512, 256) if _SMALL_VMEM else (2048, 1024, 512, 256)


# ---------------------------------------------------------------------------
# Fused matmul + BN scale/shift (+ residual) (+ ReLU) Pallas kernels
# ---------------------------------------------------------------------------

def _mm_kernel_multi_k(a_ref, b_ref, scale_ref, shift_ref, *rest,
                       apply_relu, has_residual):
    if has_residual:
        res_ref, o_ref, acc_ref = rest
    else:
        o_ref, acc_ref = rest

    k = pl.program_id(2)

    @pl.when(k == 0)
    def _():
        acc_ref[...] = jnp.zeros_like(acc_ref)

    acc_ref[...] += jnp.dot(a_ref[...], b_ref[...],
                            preferred_element_type=jnp.float32)

    @pl.when(k == pl.num_programs(2) - 1)
    def _():
        out = acc_ref[...] * scale_ref[...] + shift_ref[...]
        if has_residual:
            out = out + res_ref[...].astype(jnp.float32)
        if apply_relu:
            out = jnp.maximum(out, 0.0)
        o_ref[...] = out.astype(o_ref.dtype)


def _mm_kernel_single_k(a_ref, b_ref, scale_ref, shift_ref, *rest,
                        apply_relu, has_residual):
    if has_residual:
        res_ref, o_ref = rest
    else:
        (o_ref,) = rest
    out = jnp.dot(a_ref[...], b_ref[...], preferred_element_type=jnp.float32)
    out = out * scale_ref[...] + shift_ref[...]
    if has_residual:
        out = out + res_ref[...].astype(jnp.float32)
    if apply_relu:
        out = jnp.maximum(out, 0.0)
    o_ref[...] = out.astype(o_ref.dtype)


def _pick_m(M):
    m_pad = _round_up(M, 16)            # 16 for bf16 sublane packing
    if m_pad <= 512:
        return m_pad, m_pad
    return _round_up(M, 512), 512


def _pick_k(K):
    k0 = _round_up(K, 128)
    if k0 <= _K_TILE_CANDIDATES[0]:     # single K step
        return k0, k0
    best_pad, best_t = None, None
    for t in _K_TILE_CANDIDATES:        # minimize padding, prefer larger tile
        pad = _round_up(k0, t)
        if best_pad is None or pad < best_pad:
            best_pad, best_t = pad, t
    return best_pad, best_t


def _pick_n(N):
    n0 = _round_up(N, 128)
    if n0 <= 1024:                      # single N tile -> A read from HBM once
        return n0, n0
    return _round_up(n0, 1024), 1024


def _matmul_fused(a, b, scale, shift, residual, *, relu, out_dtype):
    """out = act((a @ b) * scale + shift [+ residual]); bf16 MXU, f32 accumulate."""
    M, K = a.shape
    K2, N = b.shape
    assert K == K2
    M_pad, tile_m = _pick_m(M)
    K_pad, tile_k = _pick_k(K)
    N_pad, tile_n = _pick_n(N)

    # Ensure >=2 parallel grid steps so both v7x TensorCores get work.
    if (M_pad // tile_m) * (N_pad // tile_n) == 1:
        if N_pad >= 256 and N_pad % 256 == 0:
            tile_n = N_pad // 2
        elif M_pad >= 32 and M_pad % 32 == 0:
            tile_m = M_pad // 2

    a_p = _pad2(a.astype(jnp.bfloat16), M_pad, K_pad)
    b_p = _pad2(b.astype(jnp.bfloat16), K_pad, N_pad)
    sc_p = _pad2(scale.astype(jnp.float32).reshape(1, N), 1, N_pad)
    sh_p = _pad2(shift.astype(jnp.float32).reshape(1, N), 1, N_pad)

    has_res = residual is not None
    single_k = (K_pad == tile_k)

    if single_k:
        grid = (M_pad // tile_m, N_pad // tile_n)
        a_map = lambda i, j: (i, 0)
        b_map = lambda i, j: (0, j)
        v_map = lambda i, j: (0, j)
        io_map = lambda i, j: (i, j)
        scratch = []
        sem = ("parallel", "parallel")
        kernel = functools.partial(_mm_kernel_single_k,
                                   apply_relu=relu, has_residual=has_res)
    else:
        grid = (M_pad // tile_m, N_pad // tile_n, K_pad // tile_k)
        a_map = lambda i, j, k: (i, k)
        b_map = lambda i, j, k: (k, j)
        v_map = lambda i, j, k: (0, j)
        io_map = lambda i, j, k: (i, j)
        scratch = [pltpu.VMEM((tile_m, tile_n), jnp.float32)]
        sem = ("parallel", "parallel", "arbitrary")
        kernel = functools.partial(_mm_kernel_multi_k,
                                   apply_relu=relu, has_residual=has_res)

    in_specs = [
        pl.BlockSpec((tile_m, tile_k), a_map),
        pl.BlockSpec((tile_k, tile_n), b_map),
        pl.BlockSpec((1, tile_n), v_map),
        pl.BlockSpec((1, tile_n), v_map),
    ]
    args = [a_p, b_p, sc_p, sh_p]
    if has_res:
        in_specs.append(pl.BlockSpec((tile_m, tile_n), io_map))
        args.append(_pad2(residual, M_pad, N_pad))

    m_tiles = M_pad // tile_m
    n_tiles = N_pad // tile_n
    out_bytes = jnp.dtype(out_dtype).itemsize
    res_bytes = jnp.dtype(residual.dtype).itemsize if has_res else 0
    bytes_accessed = (M_pad * K_pad * 2 * n_tiles        # A re-read per N tile
                      + K_pad * N_pad * 2 * m_tiles      # B re-read per M tile
                      + M_pad * N_pad * out_bytes
                      + M_pad * N_pad * res_bytes
                      + 2 * N_pad * 4)

    out = pl.pallas_call(
        kernel,
        out_shape=jax.ShapeDtypeStruct((M_pad, N_pad), out_dtype),
        grid_spec=pltpu.PrefetchScalarGridSpec(
            num_scalar_prefetch=0,
            grid=grid,
            in_specs=in_specs,
            out_specs=pl.BlockSpec((tile_m, tile_n), io_map),
            scratch_shapes=scratch,
        ),
        compiler_params=pltpu.CompilerParams(
            dimension_semantics=sem,
            vmem_limit_bytes=_MM_VMEM_LIMIT),
        cost_estimate=pl.CostEstimate(
            flops=2 * M * K * N, transcendentals=0,
            bytes_accessed=int(bytes_accessed)),
    )(*args)

    if M_pad == M and N_pad == N:
        return out
    return out[:M, :N]


# ---------------------------------------------------------------------------
# Conv + BN (+ residual) (+ ReLU) layer
# ---------------------------------------------------------------------------

@functools.partial(jax.jit, static_argnames=("stride", "padding", "dilation",
                                             "relu", "out_dtype"))
def conv2d_bn_act(x, w, scale, shift, residual=None, *, stride, padding,
                  dilation, relu, out_dtype=jnp.bfloat16):
    """x: (N,H,W,Cin) NHWC; w: (kh,kw,Cin,Cout). Fused conv + per-channel affine."""
    N, H, W, Cin = x.shape
    kh, kw, _, Cout = w.shape
    Ho = (H + 2 * padding - dilation * (kh - 1) - 1) // stride + 1
    Wo = (W + 2 * padding - dilation * (kw - 1) - 1) // stride + 1

    xb = x.astype(jnp.bfloat16)          # bf16 im2col: half the HBM traffic
    if padding:
        xb = jnp.pad(xb, ((0, 0), (padding, padding), (padding, padding), (0, 0)))

    if kh == 1 and kw == 1 and stride == 1:
        a = xb.reshape(N * Ho * Wo, Cin)
    else:
        # TODO(synk): fold the kh*kw tap loop into the K grid axis (read the
        # padded NHWC activation directly per K-slice) instead of materializing
        # the kh*kw-expanded im2col matrix in HBM.
        cols = []
        for i in range(kh):
            for j in range(kw):
                hs = i * dilation
                ws = j * dilation
                cols.append(xb[:, hs:hs + stride * (Ho - 1) + 1:stride,
                               ws:ws + stride * (Wo - 1) + 1:stride, :])
        a = jnp.concatenate(cols, axis=-1).reshape(N * Ho * Wo, kh * kw * Cin)

    bmat = w.astype(jnp.bfloat16).reshape(kh * kw * Cin, Cout)
    res2 = None if residual is None else residual.reshape(N * Ho * Wo, Cout)
    out = _matmul_fused(a, bmat, scale, shift, res2, relu=relu,
                        out_dtype=out_dtype)
    return out.reshape(N, Ho, Wo, Cout)


# ---------------------------------------------------------------------------
# 3x3 / stride-2 / pad-1 max pool (multi-row tiles, ~1x read amplification)
# ---------------------------------------------------------------------------

def _maxpool_kernel(xa_ref, xb_ref, o_ref):
    # xa_ref: (1, 2*TH, Wo+1, 2C)  padded rows [2*h0, 2*h0+2*TH)
    # xb_ref: (1, 1,    Wo+1, 2C)  padded row   2*h0+2*TH
    # o_ref : (1, TH,   Wo,   C)
    TH = o_ref.shape[1]
    Wo = o_ref.shape[2]
    C = o_ref.shape[3]
    for t in range(TH):
        rows = [xa_ref[0, 2 * t], xa_ref[0, 2 * t + 1]]
        if 2 * t + 2 < xa_ref.shape[1]:
            rows.append(xa_ref[0, 2 * t + 2])
        else:
            rows.append(xb_ref[0, 0])
        m = None
        for row in rows:                    # (Wo+1, 2*C): W split even/odd
            even = row[:, :C]               # taps at w = 2*j
            odd = row[:, C:]                # taps at w = 2*j + 1
            for tap in (even[:Wo], odd[:Wo], even[1:Wo + 1]):
                m = tap if m is None else jnp.maximum(m, tap)
        o_ref[0, t] = m


@jax.jit
def maxpool2d_3x3_s2_p1(x):
    N, H, W, C = x.shape
    Ho = (H - 1) // 2 + 1
    Wo = (W - 1) // 2 + 1
    TH = min(8, Ho)
    Ho_pad = _round_up(Ho, TH)
    n_hblk = Ho_pad // TH
    Hp = 2 * TH * n_hblk + 1            # rows reachable by the 2*h+2 taps
    Wp = 2 * (Wo + 1)                   # even width for the lane-split reshape
    neg = jnp.asarray(-jnp.inf, x.dtype)
    xp = jnp.pad(x, ((0, 0), (1, Hp - H - 1), (1, Wp - W - 1), (0, 0)),
                 constant_values=neg)
    xr = xp.reshape(N, Hp, Wo + 1, 2 * C)   # free reshape: w -> (w//2, parity)

    out = pl.pallas_call(
        _maxpool_kernel,
        out_shape=jax.ShapeDtypeStruct((N, Ho_pad, Wo, C), x.dtype),
        grid_spec=pltpu.PrefetchScalarGridSpec(
            num_scalar_prefetch=0,
            grid=(N, n_hblk),
            in_specs=[
                pl.BlockSpec((1, 2 * TH, Wo + 1, 2 * C),
                             lambda n, i: (n, i, 0, 0)),
                pl.BlockSpec((1, 1, Wo + 1, 2 * C),
                             lambda n, i: (n, 2 * TH * (i + 1), 0, 0)),
            ],
            out_specs=pl.BlockSpec((1, TH, Wo, C), lambda n, i: (n, i, 0, 0)),
        ),
        compiler_params=pltpu.CompilerParams(
            dimension_semantics=("parallel", "parallel")),
    )(xr, xr)
    return out[:, :Ho] if Ho_pad != Ho else out


# ---------------------------------------------------------------------------
# Separable linear maps (adaptive avg-pool / align_corners bilinear resize)
# applied by a batched "left matmul" kernel that keeps C on the lane axis.
# ---------------------------------------------------------------------------

def _leftmm_kernel(r_ref, x_ref, o_ref):
    # r_ref: (P, Q) bf16; x_ref: (TB, Q, tile_d) bf16; o_ref: (TB, P, tile_d)
    for b in range(x_ref.shape[0]):
        o_ref[b] = jnp.dot(r_ref[...], x_ref[b],
                           preferred_element_type=jnp.float32).astype(o_ref.dtype)


@functools.partial(jax.jit, static_argnames=("out_dtype",))
def _apply_matrix_leading(R, x3, out_dtype):
    """x3: (B, Q, D); R: (P, Q)  ->  out (B, P, D) = R @ x3[b]  (batched slabs)."""
    B, Q, D = x3.shape
    P = R.shape[0]
    P_pad = _round_up(P, 16)
    Q_pad = _round_up(Q, 16)
    tile_d = min(512, _round_up(D, 128))
    D_pad = _round_up(D, tile_d)
    TB = min(16, B)
    B_pad = _round_up(B, TB)

    Rp = _pad2(R.astype(jnp.bfloat16), P_pad, Q_pad)
    xp = x3.astype(jnp.bfloat16)
    if (B, Q, D) != (B_pad, Q_pad, D_pad):
        xp = jnp.pad(xp, ((0, B_pad - B), (0, Q_pad - Q), (0, D_pad - D)))

    out = pl.pallas_call(
        _leftmm_kernel,
        out_shape=jax.ShapeDtypeStruct((B_pad, P_pad, D_pad), out_dtype),
        grid_spec=pltpu.PrefetchScalarGridSpec(
            num_scalar_prefetch=0,
            grid=(B_pad // TB, D_pad // tile_d),
            in_specs=[
                pl.BlockSpec((P_pad, Q_pad), lambda b, d: (0, 0)),
                pl.BlockSpec((TB, Q_pad, tile_d), lambda b, d: (b, 0, d)),
            ],
            out_specs=pl.BlockSpec((TB, P_pad, tile_d), lambda b, d: (b, 0, d)),
        ),
        compiler_params=pltpu.CompilerParams(
            dimension_semantics=("parallel", "parallel")),
    )(Rp, xp)
    return out[:B, :P, :D]


def _apply_along_h(x, R, out_dtype):
    N, H, W, C = x.shape
    y = _apply_matrix_leading(R, x.reshape(N, H, W * C), out_dtype)
    return y.reshape(N, R.shape[0], W, C)


def _apply_along_w(x, R, out_dtype):
    N, H, W, C = x.shape
    y = _apply_matrix_leading(R, x.reshape(N * H, W, C), out_dtype)
    return y.reshape(N, H, R.shape[0], C)


def _bilinear_matrix(src, dst):
    m = np.zeros((dst, src), np.float32)
    if dst == 1:
        m[0, 0] = 1.0
        return m
    for i in range(dst):
        c = i * (src - 1) / (dst - 1)
        lo = int(np.floor(c))
        hi = min(lo + 1, src - 1)
        wgt = c - lo
        m[i, lo] += 1.0 - wgt
        m[i, hi] += wgt
    return m


def bilinear_resize(x, Hout, Wout, out_dtype=None):
    # F.interpolate(mode="bilinear", align_corners=True)
    out_dtype = x.dtype if out_dtype is None else out_dtype
    _, H, W, _ = x.shape
    Rh = jnp.asarray(_bilinear_matrix(H, Hout))
    Rw = jnp.asarray(_bilinear_matrix(W, Wout))
    return _apply_along_w(_apply_along_h(x, Rh, out_dtype), Rw, out_dtype)


def _adaptive_pool_matrix(src, dst):
    m = np.zeros((dst, src), np.float32)
    for i in range(dst):
        start = (i * src) // dst
        end = ((i + 1) * src + dst - 1) // dst
        m[i, start:end] = 1.0 / (end - start)
    return m


def adaptive_avg_pool(x, out_size):
    _, H, W, _ = x.shape
    Ph = jnp.asarray(_adaptive_pool_matrix(H, out_size))
    Pw = jnp.asarray(_adaptive_pool_matrix(W, out_size))
    return _apply_along_w(_apply_along_h(x, Ph, x.dtype), Pw, x.dtype)


# ---------------------------------------------------------------------------
# Parameter initialization (deterministic, PyTorch-default BN statistics)
# ---------------------------------------------------------------------------

_BN_EPS = 1e-5


class _KeyGen:
    def __init__(self, key):
        self._key = key
        self._i = 0

    def __call__(self):
        self._i += 1
        return jax.random.fold_in(self._key, self._i)


def _init_conv_bn(kg, cin, cout, ksize):
    w = jax.random.normal(kg(), (ksize, ksize, cin, cout), jnp.float32)
    w = (w * float(np.sqrt(2.0 / (cin * ksize * ksize)))).astype(jnp.bfloat16)
    # BatchNorm folded to per-channel scale/shift (gamma=1, beta=0, mean=0, var=1).
    gamma = jnp.ones((cout,), jnp.float32)
    beta = jnp.zeros((cout,), jnp.float32)
    mean = jnp.zeros((cout,), jnp.float32)
    var = jnp.ones((cout,), jnp.float32)
    scale = gamma / jnp.sqrt(var + _BN_EPS)
    shift = beta - mean * scale
    return {"w": w, "scale": scale, "shift": shift}


def _init_bottleneck_psp(kg, cin, mid, cout):
    return {"cbr1": _init_conv_bn(kg, cin, mid, 1),
            "cbr2": _init_conv_bn(kg, mid, mid, 3),
            "cb3": _init_conv_bn(kg, mid, cout, 1),
            "cb_res": _init_conv_bn(kg, cin, cout, 1)}


def _init_bottleneck_identity(kg, cin, mid):
    return {"cbr1": _init_conv_bn(kg, cin, mid, 1),
            "cbr2": _init_conv_bn(kg, mid, mid, 3),
            "cb3": _init_conv_bn(kg, mid, cin, 1)}


def _init_residual_block(kg, n_blocks, cin, mid, cout):
    blocks = [_init_bottleneck_psp(kg, cin, mid, cout)]
    for _ in range(n_blocks - 1):
        blocks.append(_init_bottleneck_identity(kg, cout, mid))
    return blocks


def init_pspnet_params(key, n_classes):
    kg = _KeyGen(key)
    block_config = [3, 4, 6, 3]
    return {
        "feature_conv": {
            "cbnr_1": _init_conv_bn(kg, 3, 64, 3),
            "cbnr_2": _init_conv_bn(kg, 64, 64, 3),
            "cbnr_3": _init_conv_bn(kg, 64, 128, 3),
        },
        "feature_res_1": _init_residual_block(kg, block_config[0], 128, 64, 256),
        "feature_res_2": _init_residual_block(kg, block_config[1], 256, 128, 512),
        "feature_dilated_res_1": _init_residual_block(kg, block_config[2], 512, 256, 1024),
        "feature_dilated_res_2": _init_residual_block(kg, block_config[3], 1024, 512, 2048),
        "pyramid_pooling": [_init_conv_bn(kg, 2048, 512, 1) for _ in range(4)],
        "decode": {
            "cbr": _init_conv_bn(kg, 4096, 512, 3),
            "cls_w": (jax.random.normal(kg(), (1, 1, 512, n_classes), jnp.float32)
                      * float(np.sqrt(1.0 / 512))).astype(jnp.bfloat16),
            "cls_b": jnp.zeros((n_classes,), jnp.float32),
        },
        "aux": {
            "cbr": _init_conv_bn(kg, 1024, 256, 3),
            "cls_w": (jax.random.normal(kg(), (1, 1, 256, n_classes), jnp.float32)
                      * float(np.sqrt(1.0 / 256))).astype(jnp.bfloat16),
            "cls_b": jnp.zeros((n_classes,), jnp.float32),
        },
    }


# ---------------------------------------------------------------------------
# PSPNet forward
# ---------------------------------------------------------------------------

def _cbnr(p, x, stride, padding, dilation, residual=None, out_dtype=jnp.bfloat16):
    return conv2d_bn_act(x, p["w"], p["scale"], p["shift"], residual,
                         stride=stride, padding=padding, dilation=dilation,
                         relu=True, out_dtype=out_dtype)


def _cbn(p, x, stride, padding, dilation, residual=None, out_dtype=jnp.bfloat16):
    return conv2d_bn_act(x, p["w"], p["scale"], p["shift"], residual,
                         stride=stride, padding=padding, dilation=dilation,
                         relu=False, out_dtype=out_dtype)


def _bottleneck_psp(p, x, stride, dilation):
    # Skip branch kept in f32 so the fused residual add stays full precision.
    residual = _cbn(p["cb_res"], x, stride, 0, 1, out_dtype=jnp.float32)
    conv = _cbnr(p["cbr1"], x, 1, 0, 1)
    conv = _cbnr(p["cbr2"], conv, stride, dilation, dilation)
    # cb3 conv-BN + residual add + ReLU fused in the matmul finalize
    return _cbnr(p["cb3"], conv, 1, 0, 1, residual=residual)


def _bottleneck_identity(p, x, dilation):
    conv = _cbnr(p["cbr1"], x, 1, 0, 1)
    conv = _cbnr(p["cbr2"], conv, 1, dilation, dilation)
    return _cbnr(p["cb3"], conv, 1, 0, 1, residual=x)


def _residual_block(pblocks, x, stride, dilation):
    x = _bottleneck_psp(pblocks[0], x, stride, dilation)
    for pb in pblocks[1:]:
        x = _bottleneck_identity(pb, x, dilation)
    return x


def _feature_map_convolution(p, x):
    x = _cbnr(p["cbnr_1"], x, 2, 1, 1)
    x = _cbnr(p["cbnr_2"], x, 1, 1, 1)
    x = _cbnr(p["cbnr_3"], x, 1, 1, 1)
    return maxpool2d_3x3_s2_p1(x)


def _pyramid_pooling(pbranches, x, pool_sizes, height, width):
    outs = [x]
    for p, ps in zip(pbranches, pool_sizes):
        o = adaptive_avg_pool(x, ps)
        o = _cbnr(p, o, 1, 0, 1)
        o = bilinear_resize(o, height, width)
        outs.append(o)
    return jnp.concatenate(outs, axis=-1)  # bf16 channel concat (NHWC last axis)


def _decode_head(p, x, height, width):
    x = _cbnr(p["cbr"], x, 1, 1, 1)
    # Dropout2d(p=0.1): identity in inference mode.
    ones = jnp.ones((p["cls_w"].shape[-1],), jnp.float32)
    x = conv2d_bn_act(x, p["cls_w"], ones, p["cls_b"],
                      stride=1, padding=0, dilation=1, relu=False,
                      out_dtype=jnp.float32)          # logits stay f32
    return bilinear_resize(x, height, width, out_dtype=jnp.float32)


def pspnet_forward(params, x_nchw, img_size, img_size_8):
    x = jnp.transpose(x_nchw, (0, 2, 3, 1))  # NCHW -> NHWC
    x = _feature_map_convolution(params["feature_conv"], x)
    x = _residual_block(params["feature_res_1"], x, stride=1, dilation=1)
    x = _residual_block(params["feature_res_2"], x, stride=2, dilation=1)
    x = _residual_block(params["feature_dilated_res_1"], x, stride=1, dilation=2)
    out_aux = _decode_head(params["aux"], x, img_size, img_size)
    x = _residual_block(params["feature_dilated_res_2"], x, stride=1, dilation=4)
    x = _pyramid_pooling(params["pyramid_pooling"], x, [6, 3, 2, 1],
                         img_size_8, img_size_8)
    out = _decode_head(params["decode"], x, img_size, img_size)
    # NHWC -> NCHW to match PyTorch output convention
    return (jnp.transpose(out, (0, 3, 1, 2)),
            jnp.transpose(out_aux, (0, 3, 1, 2)))


if __name__ == "__main__":
    n_classes = 8
    img_size = 32          # scaled-down stand-in for 475 (small-shape demo)
    img_size_8 = img_size // 8

    root = jax.random.PRNGKey(0)
    pkey, xkey = jax.random.split(root)
    params = init_pspnet_params(pkey, n_classes)
    x = jax.random.normal(xkey, (2, 3, img_size, img_size), jnp.float32)

    out, out_aux = pspnet_forward(params, x, img_size, img_size_8)
    out, out_aux = jax.block_until_ready((out, out_aux))

    assert out.shape == (2, n_classes, img_size, img_size), out.shape
    assert out_aux.shape == (2, n_classes, img_size, img_size), out_aux.shape
    assert bool(jnp.all(jnp.isfinite(out))) and bool(jnp.all(jnp.isfinite(out_aux)))
    print("KERNEL_OK")
</pallas_src>

<mosaic_0001>
module attributes {stable_mosaic.version = 11 : i64} {
  func.func @_mm_kernel_single_k(%arg0: i32, %arg1: i32, %arg2: memref<256x128xbf16, #tpu.memory_space<vmem>>, %arg3: memref<128x128xbf16, #tpu.memory_space<vmem>>, %arg4: memref<1x128xf32, #tpu.memory_space<vmem>>, %arg5: memref<1x128xf32, #tpu.memory_space<vmem>>, %arg6: memref<256x128xbf16, #tpu.memory_space<vmem>>) attributes {dimension_semantics = [#tpu.dimension_semantics<parallel>, #tpu.dimension_semantics<parallel>], iteration_bounds = array<i64: 2, 1>, scalar_prefetch = 0 : i64, scratch_operands = 0 : i64, tpu.core_type = #tpu.core_type<tc>, window_params = [{transform_indices = @transform_0, window_bounds = array<i64: 256, 128>}, {transform_indices = @transform_1, window_bounds = array<i64: 128, 128>}, {transform_indices = @transform_2, window_bounds = array<i64: 1, 128>}, {transform_indices = @transform_3, window_bounds = array<i64: 1, 128>}, {transform_indices = @transform_4, window_bounds = array<i64: 256, 128>}]} {
    %c0 = arith.constant 0 : index
    %c0_0 = arith.constant 0 : index
    %0 = vector.load %arg2[%c0, %c0_0] : memref<256x128xbf16, #tpu.memory_space<vmem>>, vector<256x128xbf16>
    %c0_1 = arith.constant 0 : index
    %c0_2 = arith.constant 0 : index
    %1 = vector.load %arg3[%c0_1, %c0_2] : memref<128x128xbf16, #tpu.memory_space<vmem>>, vector<128x128xbf16>
    %cst = arith.constant dense<0.000000e+00> : vector<256x128xf32>
    %2 = tpu.matmul %0, %1, %cst {dimension_numbers = #tpu.dot_dimension_numbers<[1], [0], [0], [1], [0, 0, 1, 1], [], []>} : vector<256x128xbf16>, vector<128x128xbf16>, vector<256x128xf32> -> vector<256x128xf32>
    %c0_3 = arith.constant 0 : index
    %c0_4 = arith.constant 0 : index
    %3 = vector.load %arg4[%c0_3, %c0_4] : memref<1x128xf32, #tpu.memory_space<vmem>>, vector<1x128xf32>
    %4 = vector.broadcast %3 : vector<1x128xf32> to vector<256x128xf32>
    %5 = arith.mulf %2, %4 : vector<256x128xf32>
    %c0_5 = arith.constant 0 : index
    %c0_6 = arith.constant 0 : index
    %6 = vector.load %arg5[%c0_5, %c0_6] : memref<1x128xf32, #tpu.memory_space<vmem>>, vector<1x128xf32>
    %7 = vector.broadcast %6 : vector<1x128xf32> to vector<256x128xf32>
    %8 = arith.addf %5, %7 : vector<256x128xf32>
    %cst_7 = arith.constant 0.000000e+00 : f32
    %9 = vector.broadcast %cst_7 : f32 to vector<256x128xf32>
    %10 = arith.maximumf %8, %9 : vector<256x128xf32>
    %11 = arith.truncf %10 : vector<256x128xf32> to vector<256x128xbf16>
    %c0_8 = arith.constant 0 : index
    %c0_9 = arith.constant 0 : index
    %12 = vector.load %arg6[%c0_8, %c0_9] : memref<256x128xbf16, #tpu.memory_space<vmem>>, vector<256x128xbf16>
    tpu.vector_store %arg6[%c0_8, %c0_9], %11 {strides = array<i32>} : memref<256x128xbf16, #tpu.memory_space<vmem>>, vector<256x128xbf16>,
    return
  }
  func.func @transform_0(%arg0: i32, %arg1: i32) -> (i32, i32) {
    %c0_i32 = arith.constant 0 : i32
    %c0_i32_0 = arith.constant 0 : i32
    return %arg0, %c0_i32 : i32, i32
  }
  func.func @transform_1(%arg0: i32, %arg1: i32) -> (i32, i32) {
    %c0_i32 = arith.constant 0 : i32
    %c0_i32_0 = arith.constant 0 : i32
    return %c0_i32, %arg1 : i32, i32
  }
  func.func @transform_2(%arg0: i32, %arg1: i32) -> (i32, i32) {
    %c0_i32 = arith.constant 0 : i32
    %c0_i32_0 = arith.constant 0 : i32
    return %c0_i32, %arg1 : i32, i32
  }
  func.func @transform_3(%arg0: i32, %arg1: i32) -> (i32, i32) {
    %c0_i32 = arith.constant 0 : i32
    %c0_i32_0 = arith.constant 0 : i32
    return %c0_i32, %arg1 : i32, i32
  }
  func.func @transform_4(%arg0: i32, %arg1: i32) -> (i32, i32) {
    %c0_i32 = arith.constant 0 : i32
    return %arg0, %arg1 : i32, i32
  }
}

</mosaic_0001>

<llo_original>
// kernel: conv2d_bn_act.1
$region0: #{conv2d_bn_act.1}
  #allocation0 [shape = 'u32[]', space=smem, size = 0x4, offset = 0x4, fixed_abs, tag = 'smem constant byte address 0x4 - core index']
  #allocation1 [shape = 'u32[144,128]{1,0:T(1,128)}', space=vmem, size = 0x12000, scoped, tag = 'internal scratch']
  %s0 = inlined_call_operand.hbm [shape: bf16[512,128], index: 0, kind: input, shape index: {}]
  %s1 = inlined_call_operand.hbm [shape: bf16[128,128], index: 1, kind: input, shape index: {}]
  %s2 = inlined_call_operand.hbm [shape: f32[1,128], index: 2, kind: input, shape index: {}]
  %s3 = inlined_call_operand.hbm [shape: f32[1,128], index: 3, kind: input, shape index: {}]
  %s4 = inlined_call_operand.hbm [shape: bf16[512,128], index: 4, kind: output, shape index: {}]
  %s5 = sld [smem:[#allocation0]]
  $region65: #{conv2d_bn_act.1} parent=0
    _
  %s7 = ssub.s32 1, %s5
  %s8 = scalar_select 0, %s7, %s5
  $region1: #{conv2d_bn_act.1} parent=0
    #allocation2 [shape = 'u8[131072]{0}', space=vmem, size = 0x20000, scoped, tag = 'input window, operand 0']
    #allocation3 [shape = 's32[2]{0}', space=sflag, size = 0x8, scoped, tag = 'scoped memory for conv2d_bn_act.1']
    #allocation4 [shape = 's32[2]{0}', space=sflag, size = 0x8, scoped, tag = 'scoped memory for conv2d_bn_act.1']
    #allocation5 [shape = 'u8[32768]{0}', space=vmem, size = 0x8000, scoped, tag = 'input window, operand 1, single buffered']
    #allocation6 [shape = 's32[1]{0}', space=sflag, size = 0x4, scoped, tag = 'scoped memory for conv2d_bn_act.1']
    #allocation7 [shape = 'u8[512]{0}', space=vmem, size = 0x400, scoped, tag = 'input window, operand 2, single buffered']
    #allocation8 [shape = 'u8[512]{0}', space=vmem, size = 0x400, scoped, tag = 'input window, operand 3, single buffered']
    #allocation9 [shape = 's32[1]{0}', space=sflag, size = 0x4, scoped, tag = 'scoped memory for conv2d_bn_act.1']
    #allocation10 [shape = 'u8[131072]{0}', space=vmem, size = 0x20000, scoped, tag = 'output window, operand 0']
    %9 = vsyncpa [#allocation3], 0
    %s10 = scalar_lea.sflag [#allocation3], 1
    %11 = vsyncpa %s10, 0
    %12 = vsyncpa [#allocation6], 0
    %13 = vsyncpa [#allocation9], 0
    %14 = vsyncpa [#allocation4], 0
    %s15 = scalar_lea.sflag [#allocation4], 1
    %16 = vsyncpa %s15, 0
    loop: start=0, step=1, limit=4
    $region2: #{conv2d_bn_act.1} parent=1 // loop_pre_header
      _
    $region3: #{conv2d_bn_act.1} parent=1 // loop_header
      %s18 = sphi 0, %s22
      %p19 = scmp.ge.s32.totalorder %s18, 4
      %s25 = sphi 0, %s37
      %s26 = sphi 0, %s33
      %s27 = sphi 0, %s25
      %s28 = sphi 0, %s26
      %s29 = sphi 0, %s27
      %s30 = sphi 0, %s28
      %s40 = sphi 0, %s42
      %s43 = sphi 0, %s40
      %s44 = sphi 0, %s43
      %s60 = sphi 0, %s44
      %s66 = sphi 0, %s68
      %s69 = sphi 0, %s66
      %s70 = sphi 0, %s69
      %s86 = sphi 0, %s70
      %s92 = sphi 0, %s94
      %s95 = sphi 0, %s92
      %s96 = sphi 0, %s95
      %s112 = sphi 0, %s96
      %s118 = sphi 0, %s120
      %s121 = sphi 0, %s118
      %s122 = sphi 0, %s121
      %s138 = sphi 0, %s122
      %s146 = sphi 0, %s148
      %s149 = sphi 0, %s146
      %s150 = sphi 0, %s149
      %s166 = sphi 0, %s150
    $region4: #{conv2d_bn_act.1} parent=1 // loop_header_branch
      %21 = sbr.rel (%p19) target = $region8
    $region5: #{conv2d_bn_act.1} parent=1 // loop_body
      %s23 = ssub.s32 %s18, 1
      %s24 = ssub.s32 %s18, 2
      %s31 = sadd.s32 1, %s26
      %p32 = scmp.ge.s32.totalorder %s31, 1
      %s33 = scalar_select %p32, 0, %s31
      %s34 = sadd.s32 1, %s25
      %s35 = scalar_select %p32, %s34, %s25
      %p36 = scmp.ge.s32.totalorder %s35, 2
      %s37 = scalar_select %p36, 0, %s35
      %s38 = ssub.s32 %s25, %s37
      %p39 = scmp.eq.s32.totalorder %s38, 0
      %s41 = sadd.s32 %s40, 1
      %s42 = scalar_select %p39, %s40, %s41
      %p45 = pneg %p39
      %p46 = scmp.eq.s32.totalorder %s18, 1
      %p47 = por %p45, %p46
      %p48 = scmp.ne.s32.totalorder %s40, %s43
      %p49 = scmp.eq.s32.totalorder %s18, 0
      %p50 = por %p48, %p49
      %p51 = scmp.ne.s32.totalorder %s40, %s43
      %p52 = scmp.eq.s32.totalorder %s23, 1
      %p53 = por %p51, %p52
      %p54 = scmp.ne.s32.totalorder %s43, %s44
      %p55 = scmp.eq.s32.totalorder %s23, 0
      %p56 = por %p54, %p55
      %p57 = scmp.ne.s32.totalorder %s43, %s44
      %p58 = scmp.eq.s32.totalorder %s24, 1
      %p59 = por %p57, %p58
      %p61 = scmp.ne.s32.totalorder %s44, %s60
      %p62 = scmp.eq.s32.totalorder %s24, 0
      %p63 = por %p61, %p62
      %s64 = ssub.s32 %s26, %s33
      %p65 = scmp.eq.s32.totalorder %s64, 0
      %s67 = sadd.s32 %s66, 1
      %s68 = scalar_select %p65, %s66, %s67
      %p71 = pneg %p65
      %p72 = scmp.eq.s32.totalorder %s18, 1
      %p73 = por %p71, %p72
      %p74 = scmp.ne.s32.totalorder %s66, %s69
      %p75 = scmp.eq.s32.totalorder %s18, 0
      %p76 = por %p74, %p75
      %p77 = scmp.ne.s32.totalorder %s66, %s69
      %p78 = scmp.eq.s32.totalorder %s23, 1
      %p79 = por %p77, %p78
      %p80 = scmp.ne.s32.totalorder %s69, %s70
      %p81 = scmp.eq.s32.totalorder %s23, 0
      %p82 = por %p80, %p81
      %p83 = scmp.ne.s32.totalorder %s69, %s70
      %p84 = scmp.eq.s32.totalorder %s24, 1
      %p85 = por %p83, %p84
      %p87 = scmp.ne.s32.totalorder %s70, %s86
      %p88 = scmp.eq.s32.totalorder %s24, 0
      %p89 = por %p87, %p88
      %s90 = ssub.s32 %s26, %s33
      %p91 = scmp.eq.s32.totalorder %s90, 0
      %s93 = sadd.s32 %s92, 1
      %s94 = scalar_select %p91, %s92, %s93
      %p97 = pneg %p91
      %p98 = scmp.eq.s32.totalorder %s18, 1
      %p99 = por %p97, %p98
      %p100 = scmp.ne.s32.totalorder %s92, %s95
      %p101 = scmp.eq.s32.totalorder %s18, 0
      %p102 = por %p100, %p101
      %p103 = scmp.ne.s32.totalorder %s92, %s95
      %p104 = scmp.eq.s32.totalorder %s23, 1
      %p105 = por %p103, %p104
      %p106 = scmp.ne.s32.totalorder %s95, %s96
      %p107 = scmp.eq.s32.totalorder %s23, 0
      %p108 = por %p106, %p107
      %p109 = scmp.ne.s32.totalorder %s95, %s96
      %p110 = scmp.eq.s32.totalorder %s24, 1
      %p111 = por %p109, %p110
      %p113 = scmp.ne.s32.totalorder %s96, %s112
      %p114 = scmp.eq.s32.totalorder %s24, 0
      %p115 = por %p113, %p114
      %s116 = ssub.s32 %s26, %s33
      %p117 = scmp.eq.s32.totalorder %s116, 0
      %s119 = sadd.s32 %s118, 1
      %s120 = scalar_select %p117, %s118, %s119
      %p123 = pneg %p117
      %p124 = scmp.eq.s32.totalorder %s18, 1
      %p125 = por %p123, %p124
      %p126 = scmp.ne.s32.totalorder %s118, %s121
      %p127 = scmp.eq.s32.totalorder %s18, 0
      %p128 = por %p126, %p127
      %p129 = scmp.ne.s32.totalorder %s118, %s121
      %p130 = scmp.eq.s32.totalorder %s23, 1
      %p131 = por %p129, %p130
      %p132 = scmp.ne.s32.totalorder %s121, %s122
      %p133 = scmp.eq.s32.totalorder %s23, 0
      %p134 = por %p132, %p133
      %p135 = scmp.ne.s32.totalorder %s121, %s122
      %p136 = scmp.eq.s32.totalorder %s24, 1
      %p137 = por %p135, %p136
      %p139 = scmp.ne.s32.totalorder %s122, %s138
      %p140 = scmp.eq.s32.totalorder %s24, 0
      %p141 = por %p139, %p140
      %s142 = ssub.s32 %s25, %s37
      %s143 = ssub.s32 %s26, %s33
      %s144 = sor.u32 %s142, %s143
      %p145 = scmp.eq.s32.totalorder %s144, 0
      %s147 = sadd.s32 %s146, 1
      %s148 = scalar_select %p145, %s146, %s147
      %p151 = pneg %p145
      %p152 = scmp.eq.s32.totalorder %s18, 1
      %p153 = por %p151, %p152
      %p154 = scmp.ne.s32.totalorder %s146, %s149
      %p155 = scmp.eq.s32.totalorder %s18, 0
      %p156 = por %p154, %p155
      %p157 = scmp.ne.s32.totalorder %s146, %s149
      %p158 = scmp.eq.s32.totalorder %s23, 1
      %p159 = por %p157, %p158
      %p160 = scmp.ne.s32.totalorder %s149, %s150
      %p161 = scmp.eq.s32.totalorder %s23, 0
      %p162 = por %p160, %p161
      %p163 = scmp.ne.s32.totalorder %s149, %s150
      %p164 = scmp.eq.s32.totalorder %s24, 1
      %p165 = por %p163, %p164
      %p167 = scmp.ne.s32.totalorder %s150, %s166
      %p168 = scmp.eq.s32.totalorder %s24, 0
      %p169 = por %p167, %p168
      %p170 = scmp.le.s32.totalorder 1, %s18
      %p171 = scmp.lt.s32.totalorder %s18, 3
      %p172 = pnand %p170, %p171
      %p173 = pneg %p172
      // Predicated region
      $region9: #{conv2d_bn_act.1} parent=5 // pred_check
        _
      $region10: #{conv2d_bn_act.1} parent=5 // pred_check_branch
        %175 = sbr.rel (%p172) target = $region12
      $region11: #{conv2d_bn_act.1} parent=5 // pred_region
        %s176 = ssub.s32 %s18, 1
        // Predicated region
        $region13: #{conv2d_bn_act.1} parent=11 // pred_check
          %p177 = pneg %p82
        $region14: #{conv2d_bn_act.1} parent=11 // pred_check_branch
          %179 = sbr.rel (%p177) target = $region16
        $region15: #{conv2d_bn_act.1} parent=11 // pred_region
          %s181 = ssub.s32 1024, 1024
          %182 = vsyncadd [#allocation6], %s181
          %s183 = smul.addr %s28, 64
          %s184 = scalar_lea.hbm %s1, %s183
          %s185 = sshll.u32 [#allocation5], 4
          %s186 = int_to_ptr.vmem [resolvable:$true] %s185
          %191 = dma.hbm_to_vmem [thread:$0]  %s184, 1024, %s186, [#allocation6], 64, 64, 4
        $region16: #{conv2d_bn_act.1} parent=11 // pred_fallthru
          _
        // Predicated region
        $region17: #{conv2d_bn_act.1} parent=11 // pred_check
          %p192 = pneg %p108
        $region18: #{conv2d_bn_act.1} parent=11 // pred_check_branch
          %194 = sbr.rel (%p192) target = $region20
        $region19: #{conv2d_bn_act.1} parent=11 // pred_region
          %s196 = ssub.s32 16, 16
          %197 = vsyncadd [#allocation6], %s196
          %s198 = smul.addr %s28, 16
          %s199 = scalar_lea.hbm %s2, %s198
          %s201 = sshll.u32 [#allocation7], 4
          %s202 = int_to_ptr.vmem [resolvable:$true] %s201
          %204 = dma.hbm_to_vmem [thread:$0]  %s199, 16, %s202, [#allocation6]
        $region20: #{conv2d_bn_act.1} parent=11 // pred_fallthru
          _
        // Predicated region
        $region21: #{conv2d_bn_act.1} parent=11 // pred_check
          %p205 = pneg %p134
        $region22: #{conv2d_bn_act.1} parent=11 // pred_check_branch
          %207 = sbr.rel (%p205) target = $region24
        $region23: #{conv2d_bn_act.1} parent=11 // pred_region
          %s209 = ssub.s32 16, 16
          %210 = vsyncadd [#allocation9], %s209
          %s211 = smul.addr %s28, 16
          %s212 = scalar_lea.hbm %s3, %s211
          %s214 = sshll.u32 [#allocation8], 4
          %s215 = int_to_ptr.vmem [resolvable:$true] %s214
          %217 = dma.hbm_to_vmem [thread:$0]  %s212, 16, %s215, [#allocation9]
        $region24: #{conv2d_bn_act.1} parent=11 // pred_fallthru
          _
      $region12: #{conv2d_bn_act.1} parent=5 // pred_fallthru
        _
      %p218 = scmp.lt.s32.totalorder %s18, 2
      // Predicated region
      $region25: #{conv2d_bn_act.1} parent=5 // pred_check
        %p219 = pneg %p218
      $region26: #{conv2d_bn_act.1} parent=5 // pred_check_branch
        %221 = sbr.rel (%p219) target = $region28
      $region27: #{conv2d_bn_act.1} parent=5 // pred_region
        // Predicated region
        $region29: #{conv2d_bn_act.1} parent=27 // pred_check
          %p222 = pneg %p50
        $region30: #{conv2d_bn_act.1} parent=27 // pred_check_branch
          %224 = sbr.rel (%p222) target = $region32
        $region31: #{conv2d_bn_act.1} parent=27 // pred_region
          %s225 = sand.u32 %s40, 1
          %s226 = scalar_lea.sflag [#allocation3], %s225
          %s227 = sand.u32 %s40, 1
          %s228 = smul.addr %s227, 128
          %s229 = scalar_lea.vmem [#allocation2], %s228
          %s230 = smul.u32 32, %s25
          %s232 = ssub.s32 2048, 2048
          %233 = vsyncadd %s226, %s232
          %s234 = smul.addr %s230, 64
          %s235 = scalar_lea.hbm %s0, %s234
          %s236 = sshll.u32 %s229, 4
          %s237 = int_to_ptr.vmem [resolvable:$true] %s236
          %242 = dma.hbm_to_vmem [thread:$0]  %s235, 2048, %s237, %s226, 64, 64, 4
        $region32: #{conv2d_bn_act.1} parent=27 // pred_fallthru
          _
      $region28: #{conv2d_bn_act.1} parent=5 // pred_fallthru
        _
      %p243 = scmp.le.s32.totalorder 1, %s18
      %p244 = scmp.lt.s32.totalorder %s18, 3
      %p245 = pnand %p243, %p244
      %p246 = pneg %p245
      // Predicated region
      $region33: #{conv2d_bn_act.1} parent=5 // pred_check
        _
      $region34: #{conv2d_bn_act.1} parent=5 // pred_check_branch
        %248 = sbr.rel (%p245) target = $region36
      $region35: #{conv2d_bn_act.1} parent=5 // pred_region
        %s249 = ssub.s32 %s18, 1
        %s250 = sand.u32 %s43, 1
        %s251 = scalar_lea.sflag [#allocation3], %s250
        %s252 = sand.u32 %s43, 1
        %s253 = smul.addr %s252, 128
        %s254 = scalar_lea.vmem [#allocation2], %s253
        // Predicated region
        $region37: #{conv2d_bn_act.1} parent=35 // pred_check
          %p255 = pneg %p56
        $region38: #{conv2d_bn_act.1} parent=35 // pred_check_branch
          %257 = sbr.rel (%p255) target = $region40
        $region39: #{conv2d_bn_act.1} parent=35 // pred_region
          %258 = dma.done %s251, 2048
        $region40: #{conv2d_bn_act.1} parent=35 // pred_fallthru
          _
        // Predicated region
        $region41: #{conv2d_bn_act.1} parent=35 // pred_check
          %p259 = pneg %p82
        $region42: #{conv2d_bn_act.1} parent=35 // pred_check_branch
          %261 = sbr.rel (%p259) target = $region44
        $region43: #{conv2d_bn_act.1} parent=35 // pred_region
          %262 = dma.done [#allocation6], 1024
        $region44: #{conv2d_bn_act.1} parent=35 // pred_fallthru
          _
        // Predicated region
        $region45: #{conv2d_bn_act.1} parent=35 // pred_check
          %p263 = pneg %p108
        $region46: #{conv2d_bn_act.1} parent=35 // pred_check_branch
          %265 = sbr.rel (%p263) target = $region48
        $region47: #{conv2d_bn_act.1} parent=35 // pred_region
          %266 = dma.done [#allocation6], 16
        $region48: #{conv2d_bn_act.1} parent=35 // pred_fallthru
          _
        // Predicated region
        $region49: #{conv2d_bn_act.1} parent=35 // pred_check
          %p267 = pneg %p134
        $region50: #{conv2d_bn_act.1} parent=35 // pred_check_branch
          %269 = sbr.rel (%p267) target = $region52
        $region51: #{conv2d_bn_act.1} parent=35 // pred_region
          %270 = dma.done [#allocation9], 16
        $region52: #{conv2d_bn_act.1} parent=35 // pred_fallthru
          _
        %s271 = sand.u32 %s43, 1
        %s272 = scalar_lea.sflag [#allocation3], %s271
        %s273 = sand.u32 %s43, 1
        %s274 = smul.addr %s273, 128
        %s275 = scalar_lea.vmem [#allocation2], %s274
        %p276 = pneg %p56
        %p277 = pneg %p53
        %p278 = pneg %p82
        %p279 = pneg %p79
        %p280 = pneg %p108
        %p281 = pneg %p105
        %p282 = pneg %p134
        %p283 = pneg %p131
        %p284 = pneg %p162
        %p285 = pneg %p159
        %s286 = sand.u32 %s149, 1
        %s287 = scalar_lea.sflag [#allocation4], %s286
        %s288 = sand.u32 %s149, 1
        %s289 = smul.addr %s288, 128
        %s290 = scalar_lea.vmem [#allocation10], %s289
        %s291 = smul.u32 32, %s27
        %s292 = smul.u32 32, %s27
        %v294 = vld [vmem:[%s254] sm:$0xf]
        %v295 = vld [vmem:[%s254 + $0x4] sm:$0xf]
        %v296 = vld [vmem:[%s254 + $0x8] sm:$0xf]
        %v297 = vld [vmem:[%s254 + $0xc] sm:$0xf]
        %v298 = vld [vmem:[%s254 + $0x10] sm:$0xf]
        %v299 = vld [vmem:[%s254 + $0x14] sm:$0xf]
        %v300 = vld [vmem:[%s254 + $0x18] sm:$0xf]
        %v301 = vld [vmem:[%s254 + $0x1c] sm:$0xf]
        %v302 = vld [vmem:[%s254 + $0x20] sm:$0xf]
        %v303 = vld [vmem:[%s254 + $0x24] sm:$0xf]
        %v304 = vld [vmem:[%s254 + $0x28] sm:$0xf]
        %v305 = vld [vmem:[%s254 + $0x2c] sm:$0xf]
        %v306 = vld [vmem:[%s254 + $0x30] sm:$0xf]
        %v307 = vld [vmem:[%s254 + $0x34] sm:$0xf]
        %v308 = vld [vmem:[%s254 + $0x38] sm:$0xf]
        %v309 = vld [vmem:[%s254 + $0x3c] sm:$0xf]
        %v310 = vld [vmem:[%s254 + $0x40] sm:$0xf]
        %v311 = vld [vmem:[%s254 + $0x44] sm:$0xf]
        %v312 = vld [vmem:[%s254 + $0x48] sm:$0xf]
        %v313 = vld [vmem:[%s254 + $0x4c] sm:$0xf]
        %v314 = vld [vmem:[%s254 + $0x50] sm:$0xf]
        %v315 = vld [vmem:[%s254 + $0x54] sm:$0xf]
        %v316 = vld [vmem:[%s254 + $0x58] sm:$0xf]
        %v317 = vld [vmem:[%s254 + $0x5c] sm:$0xf]
        %v318 = vld [vmem:[%s254 + $0x60] sm:$0xf]
        %v319 = vld [vmem:[%s254 + $0x64] sm:$0xf]
        %v320 = vld [vmem:[%s254 + $0x68] sm:$0xf]
        %v321 = vld [vmem:[%s254 + $0x6c] sm:$0xf]
        %v322 = vld [vmem:[%s254 + $0x70] sm:$0xf]
        %v323 = vld [vmem:[%s254 + $0x74] sm:$0xf]
        %v324 = vld [vmem:[%s254 + $0x78] sm:$0xf]
        %v325 = vld [vmem:[%s254 + $0x7c] sm:$0xf]
        %v326 = vld [vmem:[#allocation5] sm:$0xf]
        %v327 = vld [vmem:[#allocation5 + $0x4] sm:$0xf]
        %v328 = vld [vmem:[#allocation5 + $0x8] sm:$0xf]
        %v329 = vld [vmem:[#allocation5 + $0xc] sm:$0xf]
        %v330 = vld [vmem:[#allocation5 + $0x10] sm:$0xf]
        %v331 = vld [vmem:[#allocation5 + $0x14] sm:$0xf]
        %v332 = vld [vmem:[#allocation5 + $0x18] sm:$0xf]
        %v333 = vld [vmem:[#allocation5 + $0x1c] sm:$0xf]
        %v334 = vld [vmem:[#allocation5 + $0x20] sm:$0xf]
        %v335 = vld [vmem:[#allocation5 + $0x24] sm:$0xf]
        %v336 = vld [vmem:[#allocation5 + $0x28] sm:$0xf]
        %v337 = vld [vmem:[#allocation5 + $0x2c] sm:$0xf]
        %v338 = vld [vmem:[#allocation5 + $0x30] sm:$0xf]
        %v339 = vld [vmem:[#allocation5 + $0x34] sm:$0xf]
        %v340 = vld [vmem:[#allocation5 + $0x38] sm:$0xf]
        %v341 = vld [vmem:[#allocation5 + $0x3c] sm:$0xf]
        %v374 = vunpack.c.l.b16 %v294
        %v375 = vunpack.c.l.b16 %v295
        %v376 = vunpack.c.l.b16 %v296
        %v377 = vunpack.c.l.b16 %v297
        %v378 = vunpack.c.l.b16 %v298
        %v379 = vunpack.c.l.b16 %v299
        %v380 = vunpack.c.l.b16 %v300
        %v381 = vunpack.c.l.b16 %v301
        %v382 = vunpack.c.l.b16 %v302
        %v383 = vunpack.c.l.b16 %v303
        %v384 = vunpack.c.l.b16 %v304
        %v385 = vunpack.c.l.b16 %v305
        %v386 = vunpack.c.l.b16 %v306
        %v387 = vunpack.c.l.b16 %v307
        %v388 = vunpack.c.l.b16 %v308
        %v389 = vunpack.c.l.b16 %v309
        %v390 = vunpack.c.l.b16 %v310
        %v391 = vunpack.c.l.b16 %v311
        %v392 = vunpack.c.l.b16 %v312
        %v393 = vunpack.c.l.b16 %v313
        %v394 = vunpack.c.l.b16 %v314
        %v395 = vunpack.c.l.b16 %v315
        %v396 = vunpack.c.l.b16 %v316
        %v397 = vunpack.c.l.b16 %v317
        %v398 = vunpack.c.l.b16 %v318
        %v399 = vunpack.c.l.b16 %v319
        %v400 = vunpack.c.l.b16 %v320
        %v401 = vunpack.c.l.b16 %v321
        %v402 = vunpack.c.l.b16 %v322
        %v403 = vunpack.c.l.b16 %v323
        %v404 = vunpack.c.l.b16 %v324
        %v405 = vunpack.c.l.b16 %v325
        %v406 = vpack.c.b16 %v375, %v374
        %v407 = vpack.c.b16 %v377, %v376
        %v408 = vpack.c.b16 %v379, %v378
        %v409 = vpack.c.b16 %v381, %v380
        %v410 = vpack.c.b16 %v383, %v382
        %v411 = vpack.c.b16 %v385, %v384
        %v412 = vpack.c.b16 %v387, %v386
        %v413 = vpack.c.b16 %v389, %v388
        %v414 = vpack.c.b16 %v391, %v390
        %v415 = vpack.c.b16 %v393, %v392
        %v416 = vpack.c.b16 %v395, %v394
        %v417 = vpack.c.b16 %v397, %v396
        %v418 = vpack.c.b16 %v399, %v398
        %v419 = vpack.c.b16 %v401, %v400
        %v420 = vpack.c.b16 %v403, %v402
        %v421 = vpack.c.b16 %v405, %v404
        %v454 = vunpack.c.l.b16 %v326
        %v455 = vunpack.c.l.b16 %v327
        %v456 = vunpack.c.l.b16 %v328
        %v457 = vunpack.c.l.b16 %v329
        %v458 = vunpack.c.l.b16 %v330
        %v459 = vunpack.c.l.b16 %v331
        %v460 = vunpack.c.l.b16 %v332
        %v461 = vunpack.c.l.b16 %v333
        %v462 = vunpack.c.l.b16 %v334
        %v463 = vunpack.c.l.b16 %v335
        %v464 = vunpack.c.l.b16 %v336
        %v465 = vunpack.c.l.b16 %v337
        %v466 = vunpack.c.l.b16 %v338
        %v467 = vunpack.c.l.b16 %v339
        %v468 = vunpack.c.l.b16 %v340
        %v469 = vunpack.c.l.b16 %v341
        %v470 = vpack.c.b16 %v455, %v454
        %v471 = vpack.c.b16 %v457, %v456
        %v472 = vpack.c.b16 %v459, %v458
        %v473 = vpack.c.b16 %v461, %v460
        %v474 = vpack.c.b16 %v463, %v462
        %v475 = vpack.c.b16 %v465, %v464
        %v476 = vpack.c.b16 %v467, %v466
        %v477 = vpack.c.b16 %v469, %v468
        %486 = vmatprep.subr.bf16.mxu0 0
        %487 = vmatpush1.bf16.msra.mxu0 %v470
        %488 = vmatprep.subr.bf16.mxu0 0
        %489 = vmatpush1.bf16.msra.mxu0 %v471
        %490 = vmatprep.subr.bf16.mxu0 0
        %491 = vmatpush1.bf16.msra.mxu0 %v472
        %492 = vmatprep.subr.bf16.mxu0 0
        %493 = vmatpush1.bf16.msra.mxu0 %v473
        %494 = vmatprep.subr.bf16.mxu0 0
        %495 = vmatpush1.bf16.msra.mxu0 %v474
        %496 = vmatprep.subr.bf16.mxu0 0
        %497 = vmatpush1.bf16.msra.mxu0 %v475
        %498 = vmatprep.subr.bf16.mxu0 0
        %499 = vmatpush1.bf16.msra.mxu0 %v476
        %500 = vmatprep.subr.bf16.mxu0 0
        %501 = vmatpush1.bf16.msra.mxu0 %v477
        %502 = vmatprep.subr.bf16.mxu0 0
        %503 = vmatpush1.bf16.msra.mxu0 0
        %504 = vmatprep.subr.bf16.mxu0 0
        %505 = vmatpush1.bf16.msra.mxu0 0
        %506 = vmatprep.subr.bf16.mxu0 0
        %507 = vmatpush1.bf16.msra.mxu0 0
        %508 = vmatprep.subr.bf16.mxu0 0
        %509 = vmatpush1.bf16.msra.mxu0 0
        %510 = vmatprep.subr.bf16.mxu0 0
        %511 = vmatpush1.bf16.msra.mxu0 0
        %512 = vmatprep.subr.bf16.mxu0 0
        %513 = vmatpush1.bf16.msra.mxu0 0
        %514 = vmatprep.subr.bf16.mxu0 0
        %515 = vmatpush1.bf16.msra.mxu0 0
        %516 = vmatprep.subr.bf16.mxu0 0
        %517 = vmatpush1.bf16.msra.mxu0 0
        %518 = vmatprep.mubr.bf16.mxu0 0
        %519 = vmatmul.mubr.bf16.gmra.mrb[0].mxu0 %v406
        %v520 = vpop.f32.mrb[0].mxu0
        %v521 = vadd.f32 0.0, %v520
        %v522 = vpop.f32.mrb[0].mxu0
        %v523 = vpop.f32.mrb[0].mxu0
        %v524 = vadd.f32 0.0, %v523
        %v525 = vpop.f32.mrb[0].mxu0
        %526 = vmatprep.mubr.bf16.mxu0 0
        %527 = vmatmul.mubr.bf16.gmra.mrb[0].mxu0 %v407
        %v528 = vpop.f32.mrb[0].mxu0
        %v529 = vadd.f32 0.0, %v528
        %v530 = vpop.f32.mrb[0].mxu0
        %v531 = vpop.f32.mrb[0].mxu0
        %v532 = vadd.f32 0.0, %v531
        %v533 = vpop.f32.mrb[0].mxu0
        %534 = vmatprep.mubr.bf16.mxu0 0
        %535 = vmatmul.mubr.bf16.gmra.mrb[0].mxu0 %v408
        %v536 = vpop.f32.mrb[0].mxu0
        %v537 = vadd.f32 0.0, %v536
        %v538 = vpop.f32.mrb[0].mxu0
        %v539 = vpop.f32.mrb[0].mxu0
        %v540 = vadd.f32 0.0, %v539
        %v541 = vpop.f32.mrb[0].mxu0
        %542 = vmatprep.mubr.bf16.mxu0 0
        %543 = vmatmul.mubr.bf16.gmra.mrb[0].mxu0 %v409
        %v544 = vpop.f32.mrb[0].mxu0
        %v545 = vadd.f32 0.0, %v544
        %v546 = vpop.f32.mrb[0].mxu0
        %v547 = vpop.f32.mrb[0].mxu0
        %v548 = vadd.f32 0.0, %v547
        %v549 = vpop.f32.mrb[0].mxu0
        %550 = vmatprep.mubr.bf16.mxu0 0
        %551 = vmatmul.mubr.bf16.gmra.mrb[0].mxu0 %v410
        %v552 = vpop.f32.mrb[0].mxu0
        %v553 = vadd.f32 0.0, %v552
        %v554 = vpop.f32.mrb[0].mxu0
        %v555 = vpop.f32.mrb[0].mxu0
        %v556 = vadd.f32 0.0, %v555
        %v557 = vpop.f32.mrb[0].mxu0
        %558 = vmatprep.mubr.bf16.mxu0 0
        %559 = vmatmul.mubr.bf16.gmra.mrb[0].mxu0 %v411
        %v560 = vpop.f32.mrb[0].mxu0
        %v561 = vadd.f32 0.0, %v560
        %v562 = vpop.f32.mrb[0].mxu0
        %v563 = vpop.f32.mrb[0].mxu0
        %v564 = vadd.f32 0.0, %v563
        %v565 = vpop.f32.mrb[0].mxu0
        %566 = vmatprep.mubr.bf16.mxu0 0
        %567 = vmatmul.mubr.bf16.gmra.mrb[0].mxu0 %v412
        %v568 = vpop.f32.mrb[0].mxu0
        %v569 = vadd.f32 0.0, %v568
        %v570 = vpop.f32.mrb[0].mxu0
        %v571 = vpop.f32.mrb[0].mxu0
        %v572 = vadd.f32 0.0, %v571
        %v573 = vpop.f32.mrb[0].mxu0
        %574 = vmatprep.mubr.bf16.mxu0 0
        %575 = vmatmul.mubr.bf16.gmra.mrb[0].mxu0 %v413
        %v576 = vpop.f32.mrb[0].mxu0
        %v577 = vadd.f32 0.0, %v576
        %v578 = vpop.f32.mrb[0].mxu0
        %v579 = vpop.f32.mrb[0].mxu0
        %v580 = vadd.f32 0.0, %v579
        %v581 = vpop.f32.mrb[0].mxu0
        %582 = vmatprep.mubr.bf16.mxu0 0
        %583 = vmatmul.mubr.bf16.gmra.mrb[0].mxu0 %v414
        %v584 = vpop.f32.mrb[0].mxu0
        %v585 = vadd.f32 0.0, %v584
        %v586 = vpop.f32.mrb[0].mxu0
        %v587 = vpop.f32.mrb[0].mxu0
        %v588 = vadd.f32 0.0, %v587
        %v589 = vpop.f32.mrb[0].mxu0
        %590 = vmatprep.mubr.bf16.mxu0 0
        %591 = vmatmul.mubr.bf16.gmra.mrb[0].mxu0 %v415
        %v592 = vpop.f32.mrb[0].mxu0
        %v593 = vadd.f32 0.0, %v592
        %v594 = vpop.f32.mrb[0].mxu0
        %v595 = vpop.f32.mrb[0].mxu0
        %v596 = vadd.f32 0.0, %v595
        %v597 = vpop.f32.mrb[0].mxu0
        %598 = vmatprep.mubr.bf16.mxu0 0
        %599 = vmatmul.mubr.bf16.gmra.mrb[0].mxu0 %v416
        %v600 = vpop.f32.mrb[0].mxu0
        %v601 = vadd.f32 0.0, %v600
        %v602 = vpop.f32.mrb[0].mxu0
        %v603 = vpop.f32.mrb[0].mxu0
        %v604 = vadd.f32 0.0, %v603
        %v605 = vpop.f32.mrb[0].mxu0
        %606 = vmatprep.mubr.bf16.mxu0 0
        %607 = vmatmul.mubr.bf16.gmra.mrb[0].mxu0 %v417
        %v608 = vpop.f32.mrb[0].mxu0
        %v609 = vadd.f32 0.0, %v608
        %v610 = vpop.f32.mrb[0].mxu0
        %v611 = vpop.f32.mrb[0].mxu0
        %v612 = vadd.f32 0.0, %v611
        %v613 = vpop.f32.mrb[0].mxu0
        %614 = vmatprep.mubr.bf16.mxu0 0
        %615 = vmatmul.mubr.bf16.gmra.mrb[0].mxu0 %v418
        %v616 = vpop.f32.mrb[0].mxu0
        %v617 = vadd.f32 0.0, %v616
        %v618 = vpop.f32.mrb[0].mxu0
        %v619 = vpop.f32.mrb[0].mxu0
        %v620 = vadd.f32 0.0, %v619
        %v621 = vpop.f32.mrb[0].mxu0
        %622 = vmatprep.mubr.bf16.mxu0 0
        %623 = vmatmul.mubr.bf16.gmra.mrb[0].mxu0 %v419
        %v624 = vpop.f32.mrb[0].mxu0
        %v625 = vadd.f32 0.0, %v624
        %v626 = vpop.f32.mrb[0].mxu0
        %v627 = vpop.f32.mrb[0].mxu0
        %v628 = vadd.f32 0.0, %v627
        %v629 = vpop.f32.mrb[0].mxu0
        %630 = vmatprep.mubr.bf16.mxu0 0
        %631 = vmatmul.mubr.bf16.gmra.mrb[0].mxu0 %v420
        %v632 = vpop.f32.mrb[0].mxu0
        %v633 = vadd.f32 0.0, %v632
        %v634 = vpop.f32.mrb[0].mxu0
        %v635 = vpop.f32.mrb[0].mxu0
        %v636 = vadd.f32 0.0, %v635
        %v637 = vpop.f32.mrb[0].mxu0
        %638 = vmatprep.mubr.bf16.mxu0 0
        %639 = vmatmul.mubr.bf16.gmra.mrb[0].mxu0 %v421
        %v640 = vpop.f32.mrb[0].mxu0
        %v641 = vadd.f32 0.0, %v640
        %v642 = vpop.f32.mrb[0].mxu0
        %v643 = vpop.f32.mrb[0].mxu0
        %v644 = vadd.f32 0.0, %v643
        %v645 = vpop.f32.mrb[0].mxu0
        %646 = vdwg.mxu0
        %v647 = vld [vmem:[#allocation7] sm:$0x1]
        %v649 = vlaneseq
        %v650 = vshrl.u32 %v649, 7
        %v651 = vsub.s32 0, %v650
        %v652 = vrot.slane %v647, %v651
        %v654 = vmul.f32 %v521, %v652
        %v655 = vmul.f32 %v524, %v652
        %v656 = vmul.f32 %v529, %v652
        %v657 = vmul.f32 %v532, %v652
        %v658 = vmul.f32 %v537, %v652
        %v659 = vmul.f32 %v540, %v652
        %v660 = vmul.f32 %v545, %v652
        %v661 = vmul.f32 %v548, %v652
        %v662 = vmul.f32 %v553, %v652
        %v663 = vmul.f32 %v556, %v652
        %v664 = vmul.f32 %v561, %v652
        %v665 = vmul.f32 %v564, %v652
        %v666 = vmul.f32 %v569, %v652
        %v667 = vmul.f32 %v572, %v652
        %v668 = vmul.f32 %v577, %v652
        %v669 = vmul.f32 %v580, %v652
        %v670 = vmul.f32 %v585, %v652
        %v671 = vmul.f32 %v588, %v652
        %v672 = vmul.f32 %v593, %v652
        %v673 = vmul.f32 %v596, %v652
        %v674 = vmul.f32 %v601, %v652
        %v675 = vmul.f32 %v604, %v652
        %v676 = vmul.f32 %v609, %v652
        %v677 = vmul.f32 %v612, %v652
        %v678 = vmul.f32 %v617, %v652
        %v679 = vmul.f32 %v620, %v652
        %v680 = vmul.f32 %v625, %v652
        %v681 = vmul.f32 %v628, %v652
        %v682 = vmul.f32 %v633, %v652
        %v683 = vmul.f32 %v636, %v652
        %v684 = vmul.f32 %v641, %v652
        %v685 = vmul.f32 %v644, %v652
        %v686 = vld [vmem:[#allocation8] sm:$0x1]
        %v688 = vlaneseq
        %v689 = vshrl.u32 %v688, 7
        %v690 = vsub.s32 0, %v689
        %v691 = vrot.slane %v686, %v690
        %v693 = vadd.f32 %v654, %v691
        %v694 = vadd.f32 %v655, %v691
        %v695 = vadd.f32 %v656, %v691
        %v696 = vadd.f32 %v657, %v691
        %v697 = vadd.f32 %v658, %v691
        %v698 = vadd.f32 %v659, %v691
        %v699 = vadd.f32 %v660, %v691
        %v700 = vadd.f32 %v661, %v691
        %v701 = vadd.f32 %v662, %v691
        %v702 = vadd.f32 %v663, %v691
        %v703 = vadd.f32 %v664, %v691
        %v704 = vadd.f32 %v665, %v691
        %v705 = vadd.f32 %v666, %v691
        %v706 = vadd.f32 %v667, %v691
        %v707 = vadd.f32 %v668, %v691
        %v708 = vadd.f32 %v669, %v691
        %v709 = vadd.f32 %v670, %v691
        %v710 = vadd.f32 %v671, %v691
        %v711 = vadd.f32 %v672, %v691
        %v712 = vadd.f32 %v673, %v691
        %v713 = vadd.f32 %v674, %v691
        %v714 = vadd.f32 %v675, %v691
        %v715 = vadd.f32 %v676, %v691
        %v716 = vadd.f32 %v677, %v691
        %v717 = vadd.f32 %v678, %v691
        %v718 = vadd.f32 %v679, %v691
        %v719 = vadd.f32 %v680, %v691
        %v720 = vadd.f32 %v681, %v691
        %v721 = vadd.f32 %v682, %v691
        %v722 = vadd.f32 %v683, %v691
        %v723 = vadd.f32 %v684, %v691
        %v724 = vadd.f32 %v685, %v691
        %v725 = vmax.f32 %v693, 0.0
        %v726 = vmax.f32 %v694, 0.0
        %v727 = vmax.f32 %v695, 0.0
        %v728 = vmax.f32 %v696, 0.0
        %v729 = vmax.f32 %v697, 0.0
        %v730 = vmax.f32 %v698, 0.0
        %v731 = vmax.f32 %v699, 0.0
        %v732 = vmax.f32 %v700, 0.0
        %v733 = vmax.f32 %v701, 0.0
        %v734 = vmax.f32 %v702, 0.0
        %v735 = vmax.f32 %v703, 0.0
        %v736 = vmax.f32 %v704, 0.0
        %v737 = vmax.f32 %v705, 0.0
        %v738 = vmax.f32 %v706, 0.0
        %v739 = vmax.f32 %v707, 0.0
        %v740 = vmax.f32 %v708, 0.0
        %v741 = vmax.f32 %v709, 0.0
        %v742 = vmax.f32 %v710, 0.0
        %v743 = vmax.f32 %v711, 0.0
        %v744 = vmax.f32 %v712, 0.0
        %v745 = vmax.f32 %v713, 0.0
        %v746 = vmax.f32 %v714, 0.0
        %v747 = vmax.f32 %v715, 0.0
        %v748 = vmax.f32 %v716, 0.0
        %v749 = vmax.f32 %v717, 0.0
        %v750 = vmax.f32 %v718, 0.0
        %v751 = vmax.f32 %v719, 0.0
        %v752 = vmax.f32 %v720, 0.0
        %v753 = vmax.f32 %v721, 0.0
        %v754 = vmax.f32 %v722, 0.0
        %v755 = vmax.f32 %v723, 0.0
        %v756 = vmax.f32 %v724, 0.0
        %v757 = vpack.c.bf16 %v726, %v725
        %v758 = vpack.c.bf16 %v728, %v727
        %v759 = vpack.c.bf16 %v730, %v729
        %v760 = vpack.c.bf16 %v732, %v731
        %v761 = vpack.c.bf16 %v734, %v733
        %v762 = vpack.c.bf16 %v736, %v735
        %v763 = vpack.c.bf16 %v738, %v737
        %v764 = vpack.c.bf16 %v740, %v739
        %v765 = vpack.c.bf16 %v742, %v741
        %v766 = vpack.c.bf16 %v744, %v743
        %v767 = vpack.c.bf16 %v746, %v745
        %v768 = vpack.c.bf16 %v748, %v747
        %v769 = vpack.c.bf16 %v750, %v749
        %v770 = vpack.c.bf16 %v752, %v751
        %v771 = vpack.c.bf16 %v754, %v753
        %v772 = vpack.c.bf16 %v756, %v755
        %v789 = vunpack.c.l.b16 %v757
        %v790 = vunpack.c.h.b16 %v757
        %v791 = vunpack.c.l.b16 %v758
        %v792 = vunpack.c.h.b16 %v758
        %v793 = vunpack.c.l.b16 %v759
        %v794 = vunpack.c.h.b16 %v759
        %v795 = vunpack.c.l.b16 %v760
        %v796 = vunpack.c.h.b16 %v760
        %v797 = vunpack.c.l.b16 %v761
        %v798 = vunpack.c.h.b16 %v761
        %v799 = vunpack.c.l.b16 %v762
        %v800 = vunpack.c.h.b16 %v762
        %v801 = vunpack.c.l.b16 %v763
        %v802 = vunpack.c.h.b16 %v763
        %v803 = vunpack.c.l.b16 %v764
        %v804 = vunpack.c.h.b16 %v764
        %v805 = vunpack.c.l.b16 %v765
        %v806 = vunpack.c.h.b16 %v765
        %v807 = vunpack.c.l.b16 %v766
        %v808 = vunpack.c.h.b16 %v766
        %v809 = vunpack.c.l.b16 %v767
        %v810 = vunpack.c.h.b16 %v767
        %v811 = vunpack.c.l.b16 %v768
        %v812 = vunpack.c.h.b16 %v768
        %v813 = vunpack.c.l.b16 %v769
        %v814 = vunpack.c.h.b16 %v769
        %v815 = vunpack.c.l.b16 %v770
        %v816 = vunpack.c.h.b16 %v770
        %v817 = vunpack.c.l.b16 %v771
        %v818 = vunpack.c.h.b16 %v771
        %v819 = vunpack.c.l.b16 %v772
        %v820 = vunpack.c.h.b16 %v772
        %v821 = vpack.c.b16 %v789, %v789
        %v822 = vpack.c.b16 %v790, %v790
        %v823 = vpack.c.b16 %v791, %v791
        %v824 = vpack.c.b16 %v792, %v792
        %v825 = vpack.c.b16 %v793, %v793
        %v826 = vpack.c.b16 %v794, %v794
        %v827 = vpack.c.b16 %v795, %v795
        %v828 = vpack.c.b16 %v796, %v796
        %v829 = vpack.c.b16 %v797, %v797
        %v830 = vpack.c.b16 %v798, %v798
        %v831 = vpack.c.b16 %v799, %v799
        %v832 = vpack.c.b16 %v800, %v800
        %v833 = vpack.c.b16 %v801, %v801
        %v834 = vpack.c.b16 %v802, %v802
        %v835 = vpack.c.b16 %v803, %v803
        %v836 = vpack.c.b16 %v804, %v804
        %v837 = vpack.c.b16 %v805, %v805
        %v838 = vpack.c.b16 %v806, %v806
        %v839 = vpack.c.b16 %v807, %v807
        %v840 = vpack.c.b16 %v808, %v808
        %v841 = vpack.c.b16 %v809, %v809
        %v842 = vpack.c.b16 %v810, %v810
        %v843 = vpack.c.b16 %v811, %v811
        %v844 = vpack.c.b16 %v812, %v812
        %v845 = vpack.c.b16 %v813, %v813
        %v846 = vpack.c.b16 %v814, %v814
        %v847 = vpack.c.b16 %v815, %v815
        %v848 = vpack.c.b16 %v816, %v816
        %v849 = vpack.c.b16 %v817, %v817
        %v850 = vpack.c.b16 %v818, %v818
        %v851 = vpack.c.b16 %v819, %v819
        %v852 = vpack.c.b16 %v820, %v820
        %885 = vst [vmem:[%s290] sm:$0xf] %v821
        %886 = vst [vmem:[%s290 + $0x4] sm:$0xf] %v822
        %887 = vst [vmem:[%s290 + $0x8] sm:$0xf] %v823
        %888 = vst [vmem:[%s290 + $0xc] sm:$0xf] %v824
        %889 = vst [vmem:[%s290 + $0x10] sm:$0xf] %v825
        %890 = vst [vmem:[%s290 + $0x14] sm:$0xf] %v826
        %891 = vst [vmem:[%s290 + $0x18] sm:$0xf] %v827
        %892 = vst [vmem:[%s290 + $0x1c] sm:$0xf] %v828
        %893 = vst [vmem:[%s290 + $0x20] sm:$0xf] %v829
        %894 = vst [vmem:[%s290 + $0x24] sm:$0xf] %v830
        %895 = vst [vmem:[%s290 + $0x28] sm:$0xf] %v831
        %896 = vst [vmem:[%s290 + $0x2c] sm:$0xf] %v832
        %897 = vst [vmem:[%s290 + $0x30] sm:$0xf] %v833
        %898 = vst [vmem:[%s290 + $0x34] sm:$0xf] %v834
        %899 = vst [vmem:[%s290 + $0x38] sm:$0xf] %v835
        %900 = vst [vmem:[%s290 + $0x3c] sm:$0xf] %v836
        %901 = vst [vmem:[%s290 + $0x40] sm:$0xf] %v837
        %902 = vst [vmem:[%s290 + $0x44] sm:$0xf] %v838
        %903 = vst [vmem:[%s290 + $0x48] sm:$0xf] %v839
        %904 = vst [vmem:[%s290 + $0x4c] sm:$0xf] %v840
        %905 = vst [vmem:[%s290 + $0x50] sm:$0xf] %v841
        %906 = vst [vmem:[%s290 + $0x54] sm:$0xf] %v842
        %907 = vst [vmem:[%s290 + $0x58] sm:$0xf] %v843
        %908 = vst [vmem:[%s290 + $0x5c] sm:$0xf] %v844
        %909 = vst [vmem:[%s290 + $0x60] sm:$0xf] %v845
        %910 = vst [vmem:[%s290 + $0x64] sm:$0xf] %v846
        %911 = vst [vmem:[%s290 + $0x68] sm:$0xf] %v847
        %912 = vst [vmem:[%s290 + $0x6c] sm:$0xf] %v848
        %913 = vst [vmem:[%s290 + $0x70] sm:$0xf] %v849
        %914 = vst [vmem:[%s290 + $0x74] sm:$0xf] %v850
        %915 = vst [vmem:[%s290 + $0x78] sm:$0xf] %v851
        %916 = vst [vmem:[%s290 + $0x7c] sm:$0xf] %v852
        %s917 = sand.u32 %s149, 1
        %s918 = scalar_lea.sflag [#allocation4], %s917
        %s919 = sand.u32 %s149, 1
        %s920 = smul.addr %s919, 128
        %s921 = scalar_lea.vmem [#allocation10], %s920
        // Predicated region
        $region53: #{conv2d_bn_act.1} parent=35 // pred_check
          %p922 = pneg %p159
        $region54: #{conv2d_bn_act.1} parent=35 // pred_check_branch
          %924 = sbr.rel (%p922) target = $region56
        $region55: #{conv2d_bn_act.1} parent=35 // pred_region
          %s925 = smul.u32 32, %s27
          %s927 = ssub.s32 2048, 2048
          %928 = vsyncadd %s918, %s927
          %s929 = sadd.s32 %s28, %s925
          %s930 = smul.addr %s929, 64
          %s931 = scalar_lea.hbm %s4, %s930
          %s932 = sshll.u32 %s921, 4
          %s933 = int_to_ptr.vmem [resolvable:$true] %s932
          %938 = dma.vmem_to_hbm [thread:$0]  %s933, 2048, %s931, %s918, 64, 64, 4
        $region56: #{conv2d_bn_act.1} parent=35 // pred_fallthru
          _
      $region36: #{conv2d_bn_act.1} parent=5 // pred_fallthru
        _
      %p939 = scmp.le.s32.totalorder 2, %s18
      // Predicated region
      $region57: #{conv2d_bn_act.1} parent=5 // pred_check
        %p940 = pneg %p939
      $region58: #{conv2d_bn_act.1} parent=5 // pred_check_branch
        %942 = sbr.rel (%p940) target = $region60
      $region59: #{conv2d_bn_act.1} parent=5 // pred_region
        %s943 = ssub.s32 %s18, 2
        // Predicated region
        $region61: #{conv2d_bn_act.1} parent=59 // pred_check
          %p944 = pneg %p165
        $region62: #{conv2d_bn_act.1} parent=59 // pred_check_branch
          %946 = sbr.rel (%p944) target = $region64
        $region63: #{conv2d_bn_act.1} parent=59 // pred_region
          %s947 = sand.u32 %s150, 1
          %s948 = scalar_lea.sflag [#allocation4], %s947
          %s949 = sand.u32 %s150, 1
          %s950 = smul.addr %s949, 128
          %s951 = scalar_lea.vmem [#allocation10], %s950
          %952 = dma.done %s948, 2048
        $region64: #{conv2d_bn_act.1} parent=59 // pred_fallthru
          _
      $region60: #{conv2d_bn_act.1} parent=5 // pred_fallthru
        _
    $region6: #{conv2d_bn_act.1} parent=1 // loop_footer
      %s22 = sadd.s32 1, %s18
    $region7: #{conv2d_bn_act.1} parent=1 // loop_footer_branch
      %17 = sbr.rel target = $region3
    $region8: #{conv2d_bn_act.1} parent=1 // loop_exit
      _
    %953 = vsyncpa [#allocation3], 1
    %s954 = scalar_lea.sflag [#allocation3], 1
    %955 = vsyncpa %s954, 1
    %956 = vsyncpa [#allocation6], 1
    %957 = vsyncpa [#allocation9], 1
    %958 = vsyncpa [#allocation4], 1
    %s959 = scalar_lea.sflag [#allocation4], 1
    %960 = vsyncpa %s959, 1

</llo_original>
